<compile_context>
chip_gen: v7x
topology: tpu7x:2x2x1
jax: 0.10.0
libtpu: 0.0.40
codegen_flags: <defaults>
</compile_context>

<pallas_src>
import jax
import jax.numpy as jnp
from jax.experimental import pallas as pl
from jax.experimental.pallas import tpu as pltpu


def _round_up(x, m):
    return ((x + m - 1) // m) * m


def _round_down(x, m):
    return (x // m) * m


# ------------------------------------------------------------------
# TPU-generation detection (conservative fallbacks if queries fail).
# ------------------------------------------------------------------
def _tpu_config():
    kind = ""
    try:
        dev = jax.devices()[0]
        if dev.platform == "tpu":
            kind = dev.device_kind.lower()
    except Exception:
        pass
    vmem_phys = None
    try:
        vmem_phys = int(pltpu.get_tpu_info().vmem_capacity_bytes)
    except Exception:
        vmem_phys = None

    is_v5 = "v5" in kind
    is_v6 = "v6" in kind
    is_v7 = ("v7" in kind) or ("7x" in kind) or ("7e" in kind)

    if vmem_phys is None:
        vmem_phys = (128 << 20) if (is_v5 or is_v6) else (64 << 20)

    # leave headroom for compiler scratch; cap at 96 MiB even on 128 MiB chips
    vmem_limit = min(max(vmem_phys - (16 << 20), 32 << 20), 96 << 20)
    vmem_budget = (vmem_limit * 3) // 5           # what the tile picker may use

    return dict(
        elem_dtype=jnp.bfloat16 if (is_v6 or is_v7) else jnp.float32,
        num_grid_cores=2 if is_v7 else 1,
        vmem_limit=int(vmem_limit),
        vmem_budget=int(vmem_budget),
        row_target=16384 if (is_v5 or is_v6) else 8192,
    )


# ------------------------------------------------------------------
# Plain-JAX glue reproducing the PyTorch helper functions' semantics.
# ------------------------------------------------------------------
def farthest_point_sample(xyz, npoint, key):
    """xyz: [B, N, 3] -> centroids idx [B, npoint] (int32)."""
    B, N, _ = xyz.shape
    farthest = jax.random.randint(key, (B,), 0, N, dtype=jnp.int32)
    distance = jnp.full((B, N), 1e10, dtype=xyz.dtype)
    centroids = jnp.zeros((B, npoint), dtype=jnp.int32)
    batch_idx = jnp.arange(B)

    def body(i, carry):
        centroids, distance, farthest = carry
        centroids = centroids.at[:, i].set(farthest)
        centroid = xyz[batch_idx, farthest, :][:, None, :]          # [B,1,3]
        dist = jnp.sum((xyz - centroid) ** 2, axis=-1)               # [B,N]
        distance = jnp.where(dist < distance, dist, distance)
        farthest = jnp.argmax(distance, axis=-1).astype(jnp.int32)
        return centroids, distance, farthest

    centroids, _, _ = jax.lax.fori_loop(0, npoint, body,
                                        (centroids, distance, farthest))
    return centroids


def index_points(points, idx):
    """points: [B, N, C]; idx: [B, ...] -> [B, ..., C]."""
    B = points.shape[0]
    batch_idx = jnp.arange(B).reshape((B,) + (1,) * (idx.ndim - 1))
    return points[batch_idx, idx]


def square_distance(src, dst):
    """Matches the torch reference exactly, including its max_pos rescaling;
    kept for parity (fragile if all coordinates are <= 0, like the original)."""
    B, N, _ = src.shape
    _, M, _ = dst.shape
    max_pos = jnp.maximum(jnp.max(src), jnp.max(dst))
    s = src / max_pos
    d = dst / max_pos
    dist = -2.0 * jnp.matmul(s, jnp.transpose(d, (0, 2, 1)))
    dist = dist + jnp.sum(s ** 2, -1).reshape(B, N, 1)
    dist = dist + jnp.sum(d ** 2, -1).reshape(B, 1, M)
    return dist * max_pos


def query_ball_point(radius, nsample, xyz, new_xyz):
    """xyz: [B,N,3], new_xyz: [B,S,3] -> group idx [B,S,nsample] (int32)."""
    B, N, _ = xyz.shape
    S = new_xyz.shape[1]
    sqrdists = square_distance(new_xyz, xyz)                         # [B,S,N]
    group_idx = jnp.broadcast_to(jnp.arange(N, dtype=jnp.int32), (B, S, N))
    group_idx = jnp.where(sqrdists > radius ** 2, jnp.int32(N), group_idx)
    group_idx = jnp.sort(group_idx, axis=-1)[:, :, :nsample]
    group_first = jnp.broadcast_to(group_idx[:, :, :1], group_idx.shape)
    group_idx = jnp.where(group_idx == N, group_first, group_idx)
    return group_idx


# ------------------------------------------------------------------
# Pallas kernel: fused pointwise-MLP (1x1 conv + folded BN + ReLU) + max over K
# ------------------------------------------------------------------
def _make_mlp_max_kernel(n_layers, tm, K, cin_pad, cout_pad, lane_fold, elem_dtype):
    bf16_elem = (jnp.dtype(elem_dtype) == jnp.dtype(jnp.bfloat16))

    def kernel(x_ref, *refs):
        out_ref = refs[-1]
        wb = refs[:-1]

        if lane_fold:
            # Lane-dense (tm, K*Cin) block -> (K*tm, Cin) activation rows via
            # K static lane slices + one sublane concat (no lane->sublane
            # reshape).  Row order is (k, m): rows [k*tm,(k+1)*tm) hold
            # neighbor k of every center in the tile.
            parts = [x_ref[:, k * cin_pad:(k + 1) * cin_pad] for k in range(K)]
            h = jnp.concatenate(parts, axis=0)            # (K*tm, Cin) bf16
        else:
            h = x_ref[...]                                # (tm*K, Cin) bf16

        for j in range(n_layers):
            W = wb[2 * j][...]                            # (Cin_j, Cout_j) bf16
            b = wb[2 * j + 1][...]                        # (1, Cout_j) elem dtype
            acc = jnp.dot(h, W, preferred_element_type=jnp.float32)
            if bf16_elem:
                # bf16 VPU path (v6e / v7x): bias-add + ReLU in bf16
                h = jnp.maximum(acc.astype(jnp.bfloat16) + b, 0.0)
            else:
                # f32 VPU path (v5e has no bf16 VALU)
                h = jnp.maximum(acc + b, 0.0)
                if j < n_layers - 1:
                    h = h.astype(jnp.bfloat16)

        if lane_fold:
            # max over K neighbors: K-1 elementwise maxes of contiguous
            # sublane slabs (no reshape at all).
            hm = h[0:tm, :]
            for k in range(1, K):
                hm = jnp.maximum(hm, h[k * tm:(k + 1) * tm, :])
        else:
            hf = h.astype(jnp.float32)
            hm = jnp.max(hf.reshape(tm, K, cout_pad), axis=1)
        out_ref[...] = hm.astype(out_ref.dtype)

    return kernel


def _choose_tm(M, K, cin_pad, layer_widths, cout_pad, lane_fold, elem_size, cfg):
    """Pick centers-per-step: big enough to amortize the ~0.35us grid-step
    overhead, small enough to fit the generation-aware VMEM budget, with
    enough steps to pipeline and (on v7x) feed both TensorCores."""

    def tile(r, c, esz, sub):
        # real VMEM footprint of an (r, c) buffer: minor dim padded to 128
        # lanes, second-minor padded to the dtype's sublane packing
        return _round_up(max(r, 1), sub) * _round_up(c, 128) * esz

    def live_bytes(tm):
        rows = tm * K
        b = 0
        # double-buffered input block
        if lane_fold:
            b += 2 * tile(tm, K * cin_pad, 2, 16)
        else:
            b += 2 * tile(rows, cin_pad, 2, 16)
        # double-buffered weight / bias blocks (constant index_map, but Pallas
        # still allocates two buffers by default)
        bias_sub = 16 if elem_size == 2 else 8
        for cin_j, cout_j in layer_widths:
            b += 2 * tile(cin_j, cout_j, 2, 16)
            b += 2 * tile(1, cout_j, elem_size, bias_sub)
        # compiler-managed activation temporaries (conservative: all live)
        if lane_fold:
            b += tile(rows, cin_pad, 2, 16)               # relayout copy
        for _, cout_j in layer_widths:
            b += tile(rows, cout_j, 4, 8)                 # f32 MXU accumulator
            b += tile(rows, cout_j, elem_size, bias_sub)  # post-ReLU activation
        # double-buffered output block
        b += 2 * tile(tm, cout_pad, 4, 8)
        return b

    tm = max(8, _round_down(max(cfg["row_target"] // K, 8), 8))
    tm = min(tm, _round_up(M, 8))
    while tm > 8 and live_bytes(tm) > cfg["vmem_budget"]:
        tm = max(8, _round_down(tm // 2, 8))

    # enough grid steps for DMA/compute overlap and >=2 steps per TensorCore
    min_steps = 2 * cfg["num_grid_cores"]
    if M >= 8 * min_steps:
        tm = min(tm, max(8, _round_down(pl.cdiv(M, min_steps), 8)))
    return tm


def mlp_and_max(grouped, fused_ws, fused_bs, cout_true, cfg):
    """grouped: [B, S, K, Cin_pad] (bf16) -> [B, S, cout_true] (f32)."""
    B, S, K, Cin = grouped.shape
    M = B * S
    n_layers = len(fused_ws)
    cout_pad = fused_ws[-1].shape[1]
    layer_widths = [(w.shape[0], w.shape[1]) for w in fused_ws]
    elem_dtype = cfg["elem_dtype"]
    elem_size = jnp.dtype(elem_dtype).itemsize
    lane_fold = Cin < 128            # fold K into the lane dim only when sparse

    tm = _choose_tm(M, K, Cin, layer_widths, cout_pad, lane_fold, elem_size, cfg)
    n_steps = pl.cdiv(M, tm)
    n_steps = _round_up(n_steps, cfg["num_grid_cores"])   # balance v7x cores
    M_pad = n_steps * tm

    x = grouped.reshape(M, K * Cin)
    if M_pad != M:
        x = jnp.concatenate(
            [x, jnp.zeros((M_pad - M, K * Cin), x.dtype)], axis=0)

    if lane_fold:
        x2 = x                                            # (M_pad, K*Cin)
        in0 = pl.BlockSpec((tm, K * Cin), lambda i: (i, 0))
    else:
        x2 = x.reshape(M_pad * K, Cin)                    # already lane-dense
        in0 = pl.BlockSpec((tm * K, Cin), lambda i: (i, 0))

    in_specs = [in0]
    args = [x2]
    for W, b in zip(fused_ws, fused_bs):
        in_specs.append(pl.BlockSpec(W.shape, lambda i: (0, 0)))
        in_specs.append(pl.BlockSpec(b.shape, lambda i: (0, 0)))
        args += [W, b]

    out = pl.pallas_call(
        _make_mlp_max_kernel(n_layers, tm, K, Cin, cout_pad, lane_fold, elem_dtype),
        out_shape=jax.ShapeDtypeStruct((M_pad, cout_pad), jnp.float32),
        grid=(n_steps,),
        in_specs=in_specs,
        out_specs=pl.BlockSpec((tm, cout_pad), lambda i: (i, 0)),
        compiler_params=pltpu.CompilerParams(
            dimension_semantics=("parallel",),
            vmem_limit_bytes=cfg["vmem_limit"]),
    )(*args)
    return out[:M, :cout_true].reshape(B, S, cout_true)


def _mlp_and_max_ref(grouped, fused_ws, fused_bs, cout_true):
    """Pure-JAX reference (same fused/padded weights) for correctness check."""
    h = grouped.astype(jnp.float32)
    for W, b in zip(fused_ws, fused_bs):
        h = jnp.maximum(
            jnp.einsum('bskc,cd->bskd', h, W.astype(jnp.float32))
            + b.astype(jnp.float32).reshape(1, 1, 1, -1), 0.0)
    return jnp.max(h, axis=2)[..., :cout_true]


# ------------------------------------------------------------------
# Module
# ------------------------------------------------------------------
class PointNetSetAbstractionMsg:
    def __init__(self, npoint, radius_list, nsample_list, in_channel, mlp_list, key):
        self.npoint = npoint
        self.radius_list = list(radius_list)
        self.nsample_list = list(nsample_list)
        self.in_channel = in_channel
        self.use_pallas = True
        self.cfg = _tpu_config()
        self.elem_dtype = self.cfg["elem_dtype"]
        eps = 1e-5
        self.cin_pad = _round_up(in_channel + 3, 8)      # sublane-align Cin
        self.fused_w = []   # per branch: list of (Cin_j, Cout_j) bf16
        self.fused_b = []   # per branch: list of (1, Cout_j)  elem dtype
        self.out_channels = []
        for i, mlp in enumerate(mlp_list):
            ws, bs = [], []
            last_true = in_channel + 3
            last_pad = self.cin_pad
            for j, out_c in enumerate(mlp):
                k = jax.random.fold_in(jax.random.fold_in(key, i), j)
                kw, kb, kg, kbe, km, kv = jax.random.split(k, 6)
                W = 0.1 * jax.random.normal(kw, (last_true, out_c), jnp.float32)
                b = 0.01 * jax.random.normal(kb, (out_c,), jnp.float32)
                gamma = 1.0 + 0.1 * jax.random.normal(kg, (out_c,), jnp.float32)
                beta = 0.01 * jax.random.normal(kbe, (out_c,), jnp.float32)
                run_mean = 0.05 * jax.random.normal(km, (out_c,), jnp.float32)
                run_var = 1.0 + 0.1 * jax.random.uniform(kv, (out_c,), jnp.float32)
                # fold eval-mode BatchNorm into the 1x1 conv
                scale = gamma / jnp.sqrt(run_var + eps)
                Wf = W * scale[None, :]
                bf = (b - run_mean) * scale + beta
                # zero-pad EVERY layer's output channels to a multiple of 128
                # (lane-dense intermediates + lane-dense stores); padding is
                # sliced off in the wrapper.
                out_pad = _round_up(out_c, 128)
                Wp = jnp.zeros((last_pad, out_pad), jnp.float32)
                Wp = Wp.at[:last_true, :out_c].set(Wf)
                bp = jnp.zeros((out_pad,), jnp.float32).at[:out_c].set(bf)
                ws.append(Wp.astype(jnp.bfloat16))
                bs.append(bp.reshape(1, out_pad).astype(self.elem_dtype))
                last_true = out_c
                last_pad = out_pad
            self.fused_w.append(ws)
            self.fused_b.append(bs)
            self.out_channels.append(mlp[-1])

    def __call__(self, xyz, points, key):
        """
        xyz:    [B, 3, N]  point coordinates (channel-first, like PyTorch)
        points: [B, D, N]  point features (or None)
        returns new_xyz [B, 3, S], new_points_concat [B, sum(mlp[-1]), S]
        """
        xyz_t = jnp.transpose(xyz, (0, 2, 1)).astype(jnp.float32)    # [B,N,3]
        points_t = (jnp.transpose(points, (0, 2, 1))
                    if points is not None else None)                 # [B,N,D]
        B, N, _ = xyz_t.shape
        S = self.npoint

        fps_idx = farthest_point_sample(xyz_t, S, key)               # [B,S]
        new_xyz = index_points(xyz_t, fps_idx)                       # [B,S,3]

        # gather features in bf16 to halve the K-inflated HBM round-trip
        points_bf = (points_t.astype(jnp.bfloat16)
                     if points_t is not None else None)

        new_points_list = []
        for i, radius in enumerate(self.radius_list):
            K = self.nsample_list[i]
            group_idx = query_ball_point(radius, K, xyz_t, new_xyz)  # [B,S,K]
            # relative xyz computed in f32, then cast to bf16
            grouped_xyz = index_points(xyz_t, group_idx) - new_xyz[:, :, None, :]
            parts = []
            if points_bf is not None:
                parts.append(index_points(points_bf, group_idx))     # [B,S,K,D]
            parts.append(grouped_xyz.astype(jnp.bfloat16))           # [B,S,K,3]
            grouped = jnp.concatenate(parts, axis=-1)
            c_act = grouped.shape[-1]
            if c_act < self.cin_pad:
                grouped = jnp.concatenate(
                    [grouped,
                     jnp.zeros((B, S, K, self.cin_pad - c_act), jnp.bfloat16)],
                    axis=-1)                                         # [B,S,K,Cin_pad]
            if self.use_pallas:
                feat = mlp_and_max(grouped, self.fused_w[i], self.fused_b[i],
                                   self.out_channels[i], self.cfg)   # [B,S,Cout]
            else:
                feat = _mlp_and_max_ref(grouped, self.fused_w[i], self.fused_b[i],
                                        self.out_channels[i])
            new_points_list.append(jnp.transpose(feat, (0, 2, 1)))   # [B,Cout,S]

        new_xyz_out = jnp.transpose(new_xyz, (0, 2, 1))              # [B,3,S]
        new_points_concat = jnp.concatenate(new_points_list, axis=1)
        return new_xyz_out, new_points_concat


# ------------------------------------------------------------------
if __name__ == "__main__":
    key = jax.random.PRNGKey(0)
    k_xyz, k_pts, k_param, k_fps = jax.random.split(key, 4)

    B, N, D = 2, 64, 4          # batch, n points, feature channels
    npoint = 16                 # S
    radius_list = [0.4, 0.8]
    nsample_list = [8, 16]
    mlp_list = [[16, 32], [32, 64]]

    xyz = jax.random.normal(k_xyz, (B, 3, N), jnp.float32)
    points = jax.random.normal(k_pts, (B, D, N), jnp.float32)

    module = PointNetSetAbstractionMsg(npoint, radius_list, nsample_list,
                                       in_channel=D, mlp_list=mlp_list,
                                       key=k_param)
    new_xyz, new_points = module(xyz, points, k_fps)
    jax.block_until_ready((new_xyz, new_points))

    assert new_xyz.shape == (B, 3, npoint)
    assert new_points.shape == (B, sum(m[-1] for m in mlp_list), npoint)
    assert bool(jnp.all(jnp.isfinite(new_xyz)))
    assert bool(jnp.all(jnp.isfinite(new_points)))

    # correctness check against the pure-JAX reference path
    module.use_pallas = False
    ref_xyz, ref_points = module(xyz, points, k_fps)
    jax.block_until_ready((ref_xyz, ref_points))
    assert bool(jnp.allclose(new_xyz, ref_xyz))
    assert bool(jnp.allclose(new_points, ref_points, atol=4e-2, rtol=4e-2))

    print("KERNEL_OK")
</pallas_src>

<mosaic_0001>
module attributes {stable_mosaic.version = 11 : i64} {
  func.func @kernel(%arg0: i32, %arg1: memref<16x64xbf16, #tpu.memory_space<vmem>>, %arg2: memref<8x128xbf16, #tpu.memory_space<vmem>>, %arg3: memref<1x128xf32, #tpu.memory_space<vmem>>, %arg4: memref<128x128xbf16, #tpu.memory_space<vmem>>, %arg5: memref<1x128xf32, #tpu.memory_space<vmem>>, %arg6: memref<16x128xf32, #tpu.memory_space<vmem>>) attributes {dimension_semantics = [#tpu.dimension_semantics<parallel>], iteration_bounds = array<i64: 2>, scalar_prefetch = 0 : i64, scratch_operands = 0 : i64, tpu.core_type = #tpu.core_type<tc>, window_params = [{transform_indices = @transform_0, window_bounds = array<i64: 16, 64>}, {pipeline_mode = #tpu.pipeline_mode<synchronous>, transform_indices = @transform_1, window_bounds = array<i64: 8, 128>}, {pipeline_mode = #tpu.pipeline_mode<synchronous>, transform_indices = @transform_2, window_bounds = array<i64: 1, 128>}, {pipeline_mode = #tpu.pipeline_mode<synchronous>, transform_indices = @transform_3, window_bounds = array<i64: 128, 128>}, {pipeline_mode = #tpu.pipeline_mode<synchronous>, transform_indices = @transform_4, window_bounds = array<i64: 1, 128>}, {transform_indices = @transform_5, window_bounds = array<i64: 16, 128>}]} {
    %c0 = arith.constant 0 : index
    %c0_0 = arith.constant 0 : index
    %0 = vector.load %arg1[%c0, %c0_0] : memref<16x64xbf16, #tpu.memory_space<vmem>>, vector<16x8xbf16>
    %c0_1 = arith.constant 0 : index
    %c8 = arith.constant 8 : index
    %1 = vector.load %arg1[%c0_1, %c8] : memref<16x64xbf16, #tpu.memory_space<vmem>>, vector<16x8xbf16>
    %c0_2 = arith.constant 0 : index
    %c16 = arith.constant 16 : index
    %2 = vector.load %arg1[%c0_2, %c16] : memref<16x64xbf16, #tpu.memory_space<vmem>>, vector<16x8xbf16>
    %c0_3 = arith.constant 0 : index
    %c24 = arith.constant 24 : index
    %3 = vector.load %arg1[%c0_3, %c24] : memref<16x64xbf16, #tpu.memory_space<vmem>>, vector<16x8xbf16>
    %c0_4 = arith.constant 0 : index
    %c32 = arith.constant 32 : index
    %4 = vector.load %arg1[%c0_4, %c32] : memref<16x64xbf16, #tpu.memory_space<vmem>>, vector<16x8xbf16>
    %c0_5 = arith.constant 0 : index
    %c40 = arith.constant 40 : index
    %5 = vector.load %arg1[%c0_5, %c40] : memref<16x64xbf16, #tpu.memory_space<vmem>>, vector<16x8xbf16>
    %c0_6 = arith.constant 0 : index
    %c48 = arith.constant 48 : index
    %6 = vector.load %arg1[%c0_6, %c48] : memref<16x64xbf16, #tpu.memory_space<vmem>>, vector<16x8xbf16>
    %c0_7 = arith.constant 0 : index
    %c56 = arith.constant 56 : index
    %7 = vector.load %arg1[%c0_7, %c56] : memref<16x64xbf16, #tpu.memory_space<vmem>>, vector<16x8xbf16>
    %8 = tpu.concatenate %0, %1, %2, %3, %4, %5, %6, %7 in 0 : vector<16x8xbf16>, vector<16x8xbf16>, vector<16x8xbf16>, vector<16x8xbf16>, vector<16x8xbf16>, vector<16x8xbf16>, vector<16x8xbf16>, vector<16x8xbf16> -> vector<128x8xbf16>
    %c0_8 = arith.constant 0 : index
    %c0_9 = arith.constant 0 : index
    %9 = vector.load %arg2[%c0_8, %c0_9] : memref<8x128xbf16, #tpu.memory_space<vmem>>, vector<8x128xbf16>
    %c0_10 = arith.constant 0 : index
    %c0_11 = arith.constant 0 : index
    %10 = vector.load %arg3[%c0_10, %c0_11] : memref<1x128xf32, #tpu.memory_space<vmem>>, vector<1x128xf32>
    %cst = arith.constant dense<0.000000e+00> : vector<128x128xf32>
    %11 = tpu.matmul %8, %9, %cst {dimension_numbers = #tpu.dot_dimension_numbers<[1], [0], [0], [1], [0, 0, 1, 1], [], []>} : vector<128x8xbf16>, vector<8x128xbf16>, vector<128x128xf32> -> vector<128x128xf32>
    %12 = vector.broadcast %10 : vector<1x128xf32> to vector<128x128xf32>
    %13 = arith.addf %11, %12 : vector<128x128xf32>
    %cst_12 = arith.constant 0.000000e+00 : f32
    %14 = vector.broadcast %cst_12 : f32 to vector<128x128xf32>
    %15 = arith.maximumf %13, %14 : vector<128x128xf32>
    %16 = arith.truncf %15 : vector<128x128xf32> to vector<128x128xbf16>
    %c0_13 = arith.constant 0 : index
    %c0_14 = arith.constant 0 : index
    %17 = vector.load %arg4[%c0_13, %c0_14] : memref<128x128xbf16, #tpu.memory_space<vmem>>, vector<128x128xbf16>
    %c0_15 = arith.constant 0 : index
    %c0_16 = arith.constant 0 : index
    %18 = vector.load %arg5[%c0_15, %c0_16] : memref<1x128xf32, #tpu.memory_space<vmem>>, vector<1x128xf32>
    %cst_17 = arith.constant dense<0.000000e+00> : vector<128x128xf32>
    %19 = tpu.matmul %16, %17, %cst_17 {dimension_numbers = #tpu.dot_dimension_numbers<[1], [0], [0], [1], [0, 0, 1, 1], [], []>} : vector<128x128xbf16>, vector<128x128xbf16>, vector<128x128xf32> -> vector<128x128xf32>
    %20 = vector.broadcast %18 : vector<1x128xf32> to vector<128x128xf32>
    %21 = arith.addf %19, %20 : vector<128x128xf32>
    %cst_18 = arith.constant 0.000000e+00 : f32
    %22 = vector.broadcast %cst_18 : f32 to vector<128x128xf32>
    %23 = arith.maximumf %21, %22 : vector<128x128xf32>
    %24 = vector.extract_strided_slice %23 {offsets = [0, 0], sizes = [16, 128], strides = [1, 1]} : vector<128x128xf32> to vector<16x128xf32>
    %25 = vector.extract_strided_slice %23 {offsets = [16, 0], sizes = [16, 128], strides = [1, 1]} : vector<128x128xf32> to vector<16x128xf32>
    %26 = arith.maximumf %24, %25 : vector<16x128xf32>
    %27 = vector.extract_strided_slice %23 {offsets = [32, 0], sizes = [16, 128], strides = [1, 1]} : vector<128x128xf32> to vector<16x128xf32>
    %28 = arith.maximumf %26, %27 : vector<16x128xf32>
    %29 = vector.extract_strided_slice %23 {offsets = [48, 0], sizes = [16, 128], strides = [1, 1]} : vector<128x128xf32> to vector<16x128xf32>
    %30 = arith.maximumf %28, %29 : vector<16x128xf32>
    %31 = vector.extract_strided_slice %23 {offsets = [64, 0], sizes = [16, 128], strides = [1, 1]} : vector<128x128xf32> to vector<16x128xf32>
    %32 = arith.maximumf %30, %31 : vector<16x128xf32>
    %33 = vector.extract_strided_slice %23 {offsets = [80, 0], sizes = [16, 128], strides = [1, 1]} : vector<128x128xf32> to vector<16x128xf32>
    %34 = arith.maximumf %32, %33 : vector<16x128xf32>
    %35 = vector.extract_strided_slice %23 {offsets = [96, 0], sizes = [16, 128], strides = [1, 1]} : vector<128x128xf32> to vector<16x128xf32>
    %36 = arith.maximumf %34, %35 : vector<16x128xf32>
    %37 = vector.extract_strided_slice %23 {offsets = [112, 0], sizes = [16, 128], strides = [1, 1]} : vector<128x128xf32> to vector<16x128xf32>
    %38 = arith.maximumf %36, %37 : vector<16x128xf32>
    %c0_19 = arith.constant 0 : index
    %c0_20 = arith.constant 0 : index
    %39 = vector.load %arg6[%c0_19, %c0_20] : memref<16x128xf32, #tpu.memory_space<vmem>>, vector<16x128xf32>
    tpu.vector_store %arg6[%c0_19, %c0_20], %38 {strides = array<i32>} : memref<16x128xf32, #tpu.memory_space<vmem>>, vector<16x128xf32>,
    return
  }
  func.func @transform_0(%arg0: i32) -> (i32, i32) {
    %c0_i32 = arith.constant 0 : i32
    %c0_i32_0 = arith.constant 0 : i32
    return %arg0, %c0_i32 : i32, i32
  }
  func.func @transform_1(%arg0: i32) -> (i32, i32) {
    %c0_i32 = arith.constant 0 : i32
    %c0_i32_0 = arith.constant 0 : i32
    %c0_i32_1 = arith.constant 0 : i32
    return %c0_i32, %c0_i32_0 : i32, i32
  }
  func.func @transform_2(%arg0: i32) -> (i32, i32) {
    %c0_i32 = arith.constant 0 : i32
    %c0_i32_0 = arith.constant 0 : i32
    %c0_i32_1 = arith.constant 0 : i32
    return %c0_i32, %c0_i32_0 : i32, i32
  }
  func.func @transform_3(%arg0: i32) -> (i32, i32) {
    %c0_i32 = arith.constant 0 : i32
    %c0_i32_0 = arith.constant 0 : i32
    %c0_i32_1 = arith.constant 0 : i32
    return %c0_i32, %c0_i32_0 : i32, i32
  }
  func.func @transform_4(%arg0: i32) -> (i32, i32) {
    %c0_i32 = arith.constant 0 : i32
    %c0_i32_0 = arith.constant 0 : i32
    %c0_i32_1 = arith.constant 0 : i32
    return %c0_i32, %c0_i32_0 : i32, i32
  }
  func.func @transform_5(%arg0: i32) -> (i32, i32) {
    %c0_i32 = arith.constant 0 : i32
    %c0_i32_0 = arith.constant 0 : i32
    return %arg0, %c0_i32 : i32, i32
  }
}

</mosaic_0001>

<llo_original>
// kernel: tpu_custom_call.1
$region0: #{tpu_custom_call.1}
  #allocation0 [shape = 'u32[]', space=smem, size = 0x4, offset = 0x4, fixed_abs, tag = 'smem constant byte address 0x4 - core index']
  #allocation1 [shape = 'u32[144,128]{1,0:T(1,128)}', space=vmem, size = 0x12000, scoped, tag = 'internal scratch']
  %s0 = inlined_call_operand.hbm [shape: bf16[32,64], index: 0, kind: input, shape index: {}]
  %s1 = inlined_call_operand.hbm [shape: bf16[8,128], index: 1, kind: input, shape index: {}]
  %s2 = inlined_call_operand.vmem [shape: f32[1,128], index: 2, kind: input, shape index: {}]
  %s3 = inlined_call_operand.hbm [shape: bf16[128,128], index: 3, kind: input, shape index: {}]
  %s4 = inlined_call_operand.vmem [shape: f32[1,128], index: 4, kind: input, shape index: {}]
  %s5 = inlined_call_operand.hbm [shape: f32[32,128], index: 5, kind: output, shape index: {}]
  %s6 = sld [smem:[#allocation0]]
  $region65: #{tpu_custom_call.1} parent=0
    _
  %s8 = ssub.s32 1, %s6
  %s9 = scalar_select 0, %s8, %s6
  $region1: #{tpu_custom_call.1} parent=0
    #allocation2 [shape = 'u8[8192]{0}', space=vmem, size = 0x2000, scoped, tag = 'input window, operand 0']
    #allocation3 [shape = 's32[2]{0}', space=sflag, size = 0x8, scoped, tag = 'scoped memory for tpu_custom_call.1']
    #allocation4 [shape = 's32[2]{0}', space=sflag, size = 0x8, scoped, tag = 'scoped memory for tpu_custom_call.1']
    #allocation5 [shape = 'u8[2048]{0}', space=vmem, size = 0x800, scoped, tag = 'input window, operand 1, single buffered']
    #allocation6 [shape = 's32[1]{0}', space=sflag, size = 0x4, scoped, tag = 'scoped memory for tpu_custom_call.1']
    #allocation7 [shape = 'u8[32768]{0}', space=vmem, size = 0x8000, scoped, tag = 'input window, operand 3, single buffered']
    #allocation8 [shape = 'u8[16384]{0}', space=vmem, size = 0x4000, scoped, tag = 'output window, operand 0']
    %10 = vsyncpa [#allocation3], 0
    %s11 = scalar_lea.sflag [#allocation3], 1
    %12 = vsyncpa %s11, 0
    %13 = vsyncpa [#allocation6], 0
    %14 = vsyncpa [#allocation4], 0
    %s15 = scalar_lea.sflag [#allocation4], 1
    %16 = vsyncpa %s15, 0
    loop: start=0, step=1, limit=4
    $region2: #{tpu_custom_call.1} parent=1 // loop_pre_header
      _
    $region3: #{tpu_custom_call.1} parent=1 // loop_header
      %s18 = sphi 0, %s22
      %p19 = scmp.ge.s32.totalorder %s18, 4
      %s28 = sphi 0, %s30
      %s31 = sphi 0, %s28
      %s32 = sphi 0, %s31
      %s48 = sphi 0, %s32
      %s52 = sphi 0, %s52
      %s54 = sphi 0, %s52
      %s55 = sphi 0, %s54
      %s69 = sphi 0, %s55
      %s73 = sphi 0, %s73
      %s75 = sphi 0, %s73
      %s76 = sphi 0, %s75
      %s90 = sphi 0, %s76
      %s94 = sphi 0, %s94
      %s96 = sphi 0, %s94
      %s97 = sphi 0, %s96
      %s111 = sphi 0, %s97
      %s115 = sphi 0, %s115
      %s117 = sphi 0, %s115
      %s118 = sphi 0, %s117
      %s132 = sphi 0, %s118
      %s138 = sphi 0, %s140
      %s141 = sphi 0, %s138
      %s142 = sphi 0, %s141
      %s158 = sphi 0, %s142
    $region4: #{tpu_custom_call.1} parent=1 // loop_header_branch
      %21 = sbr.rel (%p19) target = $region8
    $region5: #{tpu_custom_call.1} parent=1 // loop_body
      %s23 = ssub.s32 %s18, 1
      %s24 = ssub.s32 %s18, 2
      %s25 = sadd.s32 %s18, 1
      %s26 = ssub.s32 %s18, %s25
      %p27 = scmp.eq.s32.totalorder %s26, 0
      %s29 = sadd.s32 %s28, 1
      %s30 = scalar_select %p27, %s28, %s29
      %p33 = pneg %p27
      %p34 = scmp.eq.s32.totalorder %s18, 1
      %p35 = por %p33, %p34
      %p36 = scmp.ne.s32.totalorder %s28, %s31
      %p37 = scmp.eq.s32.totalorder %s18, 0
      %p38 = por %p36, %p37
      %p39 = scmp.ne.s32.totalorder %s28, %s31
      %p40 = scmp.eq.s32.totalorder %s23, 1
      %p41 = por %p39, %p40
      %p42 = scmp.ne.s32.totalorder %s31, %s32
      %p43 = scmp.eq.s32.totalorder %s23, 0
      %p44 = por %p42, %p43
      %p45 = scmp.ne.s32.totalorder %s31, %s32
      %p46 = scmp.eq.s32.totalorder %s24, 1
      %p47 = por %p45, %p46
      %p49 = scmp.ne.s32.totalorder %s32, %s48
      %p50 = scmp.eq.s32.totalorder %s24, 0
      %p51 = por %p49, %p50
      %s53 = sadd.s32 %s52, 1
      %p56 = scmp.eq.s32.totalorder %s18, 1
      %p57 = scmp.ne.s32.totalorder %s52, %s54
      %p58 = scmp.eq.s32.totalorder %s18, 0
      %p59 = por %p57, %p58
      %p60 = scmp.ne.s32.totalorder %s52, %s54
      %p61 = scmp.eq.s32.totalorder %s23, 1
      %p62 = por %p60, %p61
      %p63 = scmp.ne.s32.totalorder %s54, %s55
      %p64 = scmp.eq.s32.totalorder %s23, 0
      %p65 = por %p63, %p64
      %p66 = scmp.ne.s32.totalorder %s54, %s55
      %p67 = scmp.eq.s32.totalorder %s24, 1
      %p68 = por %p66, %p67
      %p70 = scmp.ne.s32.totalorder %s55, %s69
      %p71 = scmp.eq.s32.totalorder %s24, 0
      %p72 = por %p70, %p71
      %s74 = sadd.s32 %s73, 1
      %p77 = scmp.eq.s32.totalorder %s18, 1
      %p78 = scmp.ne.s32.totalorder %s73, %s75
      %p79 = scmp.eq.s32.totalorder %s18, 0
      %p80 = por %p78, %p79
      %p81 = scmp.ne.s32.totalorder %s73, %s75
      %p82 = scmp.eq.s32.totalorder %s23, 1
      %p83 = por %p81, %p82
      %p84 = scmp.ne.s32.totalorder %s75, %s76
      %p85 = scmp.eq.s32.totalorder %s23, 0
      %p86 = por %p84, %p85
      %p87 = scmp.ne.s32.totalorder %s75, %s76
      %p88 = scmp.eq.s32.totalorder %s24, 1
      %p89 = por %p87, %p88
      %p91 = scmp.ne.s32.totalorder %s76, %s90
      %p92 = scmp.eq.s32.totalorder %s24, 0
      %p93 = por %p91, %p92
      %s95 = sadd.s32 %s94, 1
      %p98 = scmp.eq.s32.totalorder %s18, 1
      %p99 = scmp.ne.s32.totalorder %s94, %s96
      %p100 = scmp.eq.s32.totalorder %s18, 0
      %p101 = por %p99, %p100
      %p102 = scmp.ne.s32.totalorder %s94, %s96
      %p103 = scmp.eq.s32.totalorder %s23, 1
      %p104 = por %p102, %p103
      %p105 = scmp.ne.s32.totalorder %s96, %s97
      %p106 = scmp.eq.s32.totalorder %s23, 0
      %p107 = por %p105, %p106
      %p108 = scmp.ne.s32.totalorder %s96, %s97
      %p109 = scmp.eq.s32.totalorder %s24, 1
      %p110 = por %p108, %p109
      %p112 = scmp.ne.s32.totalorder %s97, %s111
      %p113 = scmp.eq.s32.totalorder %s24, 0
      %p114 = por %p112, %p113
      %s116 = sadd.s32 %s115, 1
      %p119 = scmp.eq.s32.totalorder %s18, 1
      %p120 = scmp.ne.s32.totalorder %s115, %s117
      %p121 = scmp.eq.s32.totalorder %s18, 0
      %p122 = por %p120, %p121
      %p123 = scmp.ne.s32.totalorder %s115, %s117
      %p124 = scmp.eq.s32.totalorder %s23, 1
      %p125 = por %p123, %p124
      %p126 = scmp.ne.s32.totalorder %s117, %s118
      %p127 = scmp.eq.s32.totalorder %s23, 0
      %p128 = por %p126, %p127
      %p129 = scmp.ne.s32.totalorder %s117, %s118
      %p130 = scmp.eq.s32.totalorder %s24, 1
      %p131 = por %p129, %p130
      %p133 = scmp.ne.s32.totalorder %s118, %s132
      %p134 = scmp.eq.s32.totalorder %s24, 0
      %p135 = por %p133, %p134
      %s136 = ssub.s32 %s18, %s25
      %p137 = scmp.eq.s32.totalorder %s136, 0
      %s139 = sadd.s32 %s138, 1
      %s140 = scalar_select %p137, %s138, %s139
      %p143 = pneg %p137
      %p144 = scmp.eq.s32.totalorder %s18, 1
      %p145 = por %p143, %p144
      %p146 = scmp.ne.s32.totalorder %s138, %s141
      %p147 = scmp.eq.s32.totalorder %s18, 0
      %p148 = por %p146, %p147
      %p149 = scmp.ne.s32.totalorder %s138, %s141
      %p150 = scmp.eq.s32.totalorder %s23, 1
      %p151 = por %p149, %p150
      %p152 = scmp.ne.s32.totalorder %s141, %s142
      %p153 = scmp.eq.s32.totalorder %s23, 0
      %p154 = por %p152, %p153
      %p155 = scmp.ne.s32.totalorder %s141, %s142
      %p156 = scmp.eq.s32.totalorder %s24, 1
      %p157 = por %p155, %p156
      %p159 = scmp.ne.s32.totalorder %s142, %s158
      %p160 = scmp.eq.s32.totalorder %s24, 0
      %p161 = por %p159, %p160
      %p162 = scmp.le.s32.totalorder 1, %s18
      %p163 = scmp.lt.s32.totalorder %s18, 3
      %p164 = pnand %p162, %p163
      %p165 = pneg %p164
      // Predicated region
      $region9: #{tpu_custom_call.1} parent=5 // pred_check
        _
      $region10: #{tpu_custom_call.1} parent=5 // pred_check_branch
        %167 = sbr.rel (%p164) target = $region12
      $region11: #{tpu_custom_call.1} parent=5 // pred_region
        %s168 = ssub.s32 %s18, 1
        // Predicated region
        $region13: #{tpu_custom_call.1} parent=11 // pred_check
          %p169 = pneg %p65
        $region14: #{tpu_custom_call.1} parent=11 // pred_check_branch
          %171 = sbr.rel (%p169) target = $region16
        $region15: #{tpu_custom_call.1} parent=11 // pred_region
          %s173 = ssub.s32 64, 64
          %174 = vsyncadd [#allocation6], %s173
          %s176 = sshll.u32 [#allocation5], 4
          %s177 = int_to_ptr.vmem [resolvable:$true] %s176
          %179 = dma.hbm_to_vmem [thread:$0]  %s1, 64, %s177, [#allocation6]
        $region16: #{tpu_custom_call.1} parent=11 // pred_fallthru
          _
        // Predicated region
        $region17: #{tpu_custom_call.1} parent=11 // pred_check
          %p180 = pneg %p86
        $region18: #{tpu_custom_call.1} parent=11 // pred_check_branch
          %182 = sbr.rel (%p180) target = $region20
        $region19: #{tpu_custom_call.1} parent=11 // pred_region
          _
        $region20: #{tpu_custom_call.1} parent=11 // pred_fallthru
          _
        // Predicated region
        $region21: #{tpu_custom_call.1} parent=11 // pred_check
          %p183 = pneg %p107
        $region22: #{tpu_custom_call.1} parent=11 // pred_check_branch
          %185 = sbr.rel (%p183) target = $region24
        $region23: #{tpu_custom_call.1} parent=11 // pred_region
          %s187 = ssub.s32 1024, 1024
          %188 = vsyncadd [#allocation6], %s187
          %s189 = sshll.u32 [#allocation7], 4
          %s190 = int_to_ptr.vmem [resolvable:$true] %s189
          %195 = dma.hbm_to_vmem [thread:$0]  %s3, 1024, %s190, [#allocation6], 64, 64, 4
        $region24: #{tpu_custom_call.1} parent=11 // pred_fallthru
          _
        // Predicated region
        $region25: #{tpu_custom_call.1} parent=11 // pred_check
          %p196 = pneg %p128
        $region26: #{tpu_custom_call.1} parent=11 // pred_check_branch
          %198 = sbr.rel (%p196) target = $region28
        $region27: #{tpu_custom_call.1} parent=11 // pred_region
          _
        $region28: #{tpu_custom_call.1} parent=11 // pred_fallthru
          _
      $region12: #{tpu_custom_call.1} parent=5 // pred_fallthru
        _
      %p199 = scmp.lt.s32.totalorder %s18, 2
      // Predicated region
      $region29: #{tpu_custom_call.1} parent=5 // pred_check
        %p200 = pneg %p199
      $region30: #{tpu_custom_call.1} parent=5 // pred_check_branch
        %202 = sbr.rel (%p200) target = $region32
      $region31: #{tpu_custom_call.1} parent=5 // pred_region
        // Predicated region
        $region33: #{tpu_custom_call.1} parent=31 // pred_check
          %p203 = pneg %p38
        $region34: #{tpu_custom_call.1} parent=31 // pred_check_branch
          %205 = sbr.rel (%p203) target = $region36
        $region35: #{tpu_custom_call.1} parent=31 // pred_region
          %s206 = sand.u32 %s28, 1
          %s207 = scalar_lea.sflag [#allocation3], %s206
          %s208 = sand.u32 %s28, 1
          %s209 = smul.addr %s208, 8
          %s210 = scalar_lea.vmem [#allocation2], %s209
          %s211 = smul.u32 2, %s18
          %s213 = ssub.s32 128, 128
          %214 = vsyncadd %s207, %s213
          %s215 = smul.addr %s211, 64
          %s216 = scalar_lea.hbm %s0, %s215
          %s217 = sshll.u32 %s210, 4
          %s218 = int_to_ptr.vmem [resolvable:$true] %s217
          %223 = dma.hbm_to_vmem [thread:$0]  %s216, 128, %s218, %s207, 64, 64, 4
        $region36: #{tpu_custom_call.1} parent=31 // pred_fallthru
          _
      $region32: #{tpu_custom_call.1} parent=5 // pred_fallthru
        _
      %p224 = scmp.le.s32.totalorder 1, %s18
      %p225 = scmp.lt.s32.totalorder %s18, 3
      %p226 = pnand %p224, %p225
      %p227 = pneg %p226
      // Predicated region
      $region37: #{tpu_custom_call.1} parent=5 // pred_check
        _
      $region38: #{tpu_custom_call.1} parent=5 // pred_check_branch
        %229 = sbr.rel (%p226) target = $region40
      $region39: #{tpu_custom_call.1} parent=5 // pred_region
        %s230 = ssub.s32 %s18, 1
        %s231 = sand.u32 %s31, 1
        %s232 = scalar_lea.sflag [#allocation3], %s231
        %s233 = sand.u32 %s31, 1
        %s234 = smul.addr %s233, 8
        %s235 = scalar_lea.vmem [#allocation2], %s234
        // Predicated region
        $region41: #{tpu_custom_call.1} parent=39 // pred_check
          %p236 = pneg %p44
        $region42: #{tpu_custom_call.1} parent=39 // pred_check_branch
          %238 = sbr.rel (%p236) target = $region44
        $region43: #{tpu_custom_call.1} parent=39 // pred_region
          %239 = dma.done %s232, 128
        $region44: #{tpu_custom_call.1} parent=39 // pred_fallthru
          _
        // Predicated region
        $region45: #{tpu_custom_call.1} parent=39 // pred_check
          %p240 = pneg %p65
        $region46: #{tpu_custom_call.1} parent=39 // pred_check_branch
          %242 = sbr.rel (%p240) target = $region48
        $region47: #{tpu_custom_call.1} parent=39 // pred_region
          %243 = dma.done [#allocation6], 64
        $region48: #{tpu_custom_call.1} parent=39 // pred_fallthru
          _
        // Predicated region
        $region49: #{tpu_custom_call.1} parent=39 // pred_check
          %p244 = pneg %p107
        $region50: #{tpu_custom_call.1} parent=39 // pred_check_branch
          %246 = sbr.rel (%p244) target = $region52
        $region51: #{tpu_custom_call.1} parent=39 // pred_region
          %247 = dma.done [#allocation6], 1024
        $region52: #{tpu_custom_call.1} parent=39 // pred_fallthru
          _
        %s248 = sand.u32 %s31, 1
        %s249 = scalar_lea.sflag [#allocation3], %s248
        %s250 = sand.u32 %s31, 1
        %s251 = smul.addr %s250, 8
        %s252 = scalar_lea.vmem [#allocation2], %s251
        %p253 = pneg %p44
        %p254 = pneg %p41
        %p255 = pneg %p65
        %p256 = pneg %p62
        %p257 = pneg %p86
        %p258 = pneg %p83
        %p259 = pneg %p107
        %p260 = pneg %p104
        %p261 = pneg %p128
        %p262 = pneg %p125
        %p263 = pneg %p154
        %p264 = pneg %p151
        %s265 = sand.u32 %s141, 1
        %s266 = scalar_lea.sflag [#allocation4], %s265
        %s267 = sand.u32 %s141, 1
        %s268 = smul.addr %s267, 16
        %s269 = scalar_lea.vmem [#allocation8], %s268
        %s270 = smul.u32 2, %s23
        %s271 = smul.u32 2, %s23
        %v273 = vld [vmem:[%s235] sm:$0xf]
        %v274 = vld [vmem:[%s235 + $0x4] sm:$0xf]
        %v277 = vunpack.c.l.b16 %v273
        %v278 = vunpack.c.l.b16 %v274
        %v279 = vpack.c.b16 %v278, %v277
        %280 = vrot.lane.b32.xlu0 %v279, 120
        %v281 = vpop.permute.xlu0 %280
        %282 = vrot.lane.b32.xlu0 %v279, 112
        %v283 = vpop.permute.xlu0 %282
        %284 = vrot.lane.b32.xlu0 %v279, 104
        %v285 = vpop.permute.xlu0 %284
        %286 = vrot.lane.b32.xlu0 %v279, 96
        %v287 = vpop.permute.xlu0 %286
        %288 = vrot.lane.b32.xlu0 %v279, 88
        %v289 = vpop.permute.xlu0 %288
        %290 = vrot.lane.b32.xlu0 %v279, 80
        %v291 = vpop.permute.xlu0 %290
        %292 = vrot.lane.b32.xlu0 %v279, 72
        %v293 = vpop.permute.xlu0 %292
        %v294 = vld [vmem:[#allocation5] sm:$0xf]
        %v295 = vld [vmem:[%s2] sm:$0x1]
        %v297 = vlaneseq
        %v298 = vshrl.u32 %v297, 7
        %v299 = vsub.s32 0, %v298
        %v300 = vrot.slane %v295, %v299
        %vm302 = vcmask 64512
        %v304 = vsel %vm302, %v279, 0
        %v307 = vsel %vm302, %v281, 0
        %v310 = vsel %vm302, %v283, 0
        %v313 = vsel %vm302, %v285, 0
        %v316 = vsel %vm302, %v287, 0
        %v319 = vsel %vm302, %v289, 0
        %v322 = vsel %vm302, %v291, 0
        %v325 = vsel %vm302, %v293, 0
        %vm327 = vcmask 1043456
        %v329 = vsel %vm327, %v294, 0
        %331 = vmatprep.subr.bf16.mxu0 0
        %332 = vmatpush1.bf16.msra.mxu0 %v329
        %333 = vmatprep.subr.bf16.mxu0 0
        %334 = vmatpush1.bf16.msra.mxu0 0
        %335 = vmatprep.subr.bf16.mxu0 0
        %336 = vmatpush1.bf16.msra.mxu0 0
        %337 = vmatprep.subr.bf16.mxu0 0
        %338 = vmatpush1.bf16.msra.mxu0 0
        %339 = vmatprep.subr.bf16.mxu0 0
        %340 = vmatpush1.bf16.msra.mxu0 0
        %341 = vmatprep.subr.bf16.mxu0 0
        %342 = vmatpush1.bf16.msra.mxu0 0
        %343 = vmatprep.subr.bf16.mxu0 0
        %344 = vmatpush1.bf16.msra.mxu0 0
        %345 = vmatprep.subr.bf16.mxu0 0
        %346 = vmatpush1.bf16.msra.mxu0 0
        %347 = vmatprep.subr.bf16.mxu0 0
        %348 = vmatpush1.bf16.msra.mxu0 0
        %349 = vmatprep.subr.bf16.mxu0 0
        %350 = vmatpush1.bf16.msra.mxu0 0
        %351 = vmatprep.subr.bf16.mxu0 0
        %352 = vmatpush1.bf16.msra.mxu0 0
        %353 = vmatprep.subr.bf16.mxu0 0
        %354 = vmatpush1.bf16.msra.mxu0 0
        %355 = vmatprep.subr.bf16.mxu0 0
        %356 = vmatpush1.bf16.msra.mxu0 0
        %357 = vmatprep.subr.bf16.mxu0 0
        %358 = vmatpush1.bf16.msra.mxu0 0
        %359 = vmatprep.subr.bf16.mxu0 0
        %360 = vmatpush1.bf16.msra.mxu0 0
        %361 = vmatprep.subr.bf16.mxu0 0
        %362 = vmatpush1.bf16.msra.mxu0 0
        %363 = vmatprep.mubr.bf16.mxu0 0
        %364 = vmatmul.mubr.bf16.gmra.mrb[0].mxu0 %v304
        %v365 = vpop.f32.mrb[0].mxu0
        %v366 = vadd.f32 %v300, %v365
        %v367 = vpop.f32.mrb[0].mxu0
        %v368 = vpop.f32.mrb[0].mxu0
        %v369 = vadd.f32 %v300, %v368
        %v370 = vpop.f32.mrb[0].mxu0
        %371 = vmatprep.mubr.bf16.mxu0 0
        %372 = vmatmul.mubr.bf16.gmra.mrb[0].mxu0 %v307
        %v373 = vpop.f32.mrb[0].mxu0
        %v374 = vadd.f32 %v300, %v373
        %v375 = vpop.f32.mrb[0].mxu0
        %v376 = vpop.f32.mrb[0].mxu0
        %v377 = vadd.f32 %v300, %v376
        %v378 = vpop.f32.mrb[0].mxu0
        %379 = vmatprep.mubr.bf16.mxu0 0
        %380 = vmatmul.mubr.bf16.gmra.mrb[0].mxu0 %v310
        %v381 = vpop.f32.mrb[0].mxu0
        %v382 = vadd.f32 %v300, %v381
        %v383 = vpop.f32.mrb[0].mxu0
        %v384 = vpop.f32.mrb[0].mxu0
        %v385 = vadd.f32 %v300, %v384
        %v386 = vpop.f32.mrb[0].mxu0
        %387 = vmatprep.mubr.bf16.mxu0 0
        %388 = vmatmul.mubr.bf16.gmra.mrb[0].mxu0 %v313
        %v389 = vpop.f32.mrb[0].mxu0
        %v390 = vadd.f32 %v300, %v389
        %v391 = vpop.f32.mrb[0].mxu0
        %v392 = vpop.f32.mrb[0].mxu0
        %v393 = vadd.f32 %v300, %v392
        %v394 = vpop.f32.mrb[0].mxu0
        %395 = vmatprep.mubr.bf16.mxu0 0
        %396 = vmatmul.mubr.bf16.gmra.mrb[0].mxu0 %v316
        %v397 = vpop.f32.mrb[0].mxu0
        %v398 = vadd.f32 %v300, %v397
        %v399 = vpop.f32.mrb[0].mxu0
        %v400 = vpop.f32.mrb[0].mxu0
        %v401 = vadd.f32 %v300, %v400
        %v402 = vpop.f32.mrb[0].mxu0
        %403 = vmatprep.mubr.bf16.mxu0 0
        %404 = vmatmul.mubr.bf16.gmra.mrb[0].mxu0 %v319
        %v405 = vpop.f32.mrb[0].mxu0
        %v406 = vadd.f32 %v300, %v405
        %v407 = vpop.f32.mrb[0].mxu0
        %v408 = vpop.f32.mrb[0].mxu0
        %v409 = vadd.f32 %v300, %v408
        %v410 = vpop.f32.mrb[0].mxu0
        %411 = vmatprep.mubr.bf16.mxu0 0
        %412 = vmatmul.mubr.bf16.gmra.mrb[0].mxu0 %v322
        %v413 = vpop.f32.mrb[0].mxu0
        %v414 = vadd.f32 %v300, %v413
        %v415 = vpop.f32.mrb[0].mxu0
        %v416 = vpop.f32.mrb[0].mxu0
        %v417 = vadd.f32 %v300, %v416
        %v418 = vpop.f32.mrb[0].mxu0
        %419 = vmatprep.mubr.bf16.mxu0 0
        %420 = vmatmul.mubr.bf16.gmra.mrb[0].mxu0 %v325
        %v421 = vpop.f32.mrb[0].mxu0
        %v422 = vadd.f32 %v300, %v421
        %v423 = vpop.f32.mrb[0].mxu0
        %v424 = vpop.f32.mrb[0].mxu0
        %v425 = vadd.f32 %v300, %v424
        %v426 = vpop.f32.mrb[0].mxu0
        %427 = vdwg.mxu0
        %v428 = vmax.f32 %v366, 0.0
        %v429 = vmax.f32 %v369, 0.0
        %v430 = vmax.f32 %v374, 0.0
        %v431 = vmax.f32 %v377, 0.0
        %v432 = vmax.f32 %v382, 0.0
        %v433 = vmax.f32 %v385, 0.0
        %v434 = vmax.f32 %v390, 0.0
        %v435 = vmax.f32 %v393, 0.0
        %v436 = vmax.f32 %v398, 0.0
        %v437 = vmax.f32 %v401, 0.0
        %v438 = vmax.f32 %v406, 0.0
        %v439 = vmax.f32 %v409, 0.0
        %v440 = vmax.f32 %v414, 0.0
        %v441 = vmax.f32 %v417, 0.0
        %v442 = vmax.f32 %v422, 0.0
        %v443 = vmax.f32 %v425, 0.0
        %v444 = vpack.c.bf16 %v429, %v428
        %v445 = vpack.c.bf16 %v431, %v430
        %v446 = vpack.c.bf16 %v433, %v432
        %v447 = vpack.c.bf16 %v435, %v434
        %v448 = vpack.c.bf16 %v437, %v436
        %v449 = vpack.c.bf16 %v439, %v438
        %v450 = vpack.c.bf16 %v441, %v440
        %v451 = vpack.c.bf16 %v443, %v442
        %v452 = vld [vmem:[#allocation7] sm:$0xf]
        %v453 = vld [vmem:[#allocation7 + $0x4] sm:$0xf]
        %v454 = vld [vmem:[#allocation7 + $0x8] sm:$0xf]
        %v455 = vld [vmem:[#allocation7 + $0xc] sm:$0xf]
        %v456 = vld [vmem:[#allocation7 + $0x10] sm:$0xf]
        %v457 = vld [vmem:[#allocation7 + $0x14] sm:$0xf]
        %v458 = vld [vmem:[#allocation7 + $0x18] sm:$0xf]
        %v459 = vld [vmem:[#allocation7 + $0x1c] sm:$0xf]
        %v460 = vld [vmem:[#allocation7 + $0x20] sm:$0xf]
        %v461 = vld [vmem:[#allocation7 + $0x24] sm:$0xf]
        %v462 = vld [vmem:[#allocation7 + $0x28] sm:$0xf]
        %v463 = vld [vmem:[#allocation7 + $0x2c] sm:$0xf]
        %v464 = vld [vmem:[#allocation7 + $0x30] sm:$0xf]
        %v465 = vld [vmem:[#allocation7 + $0x34] sm:$0xf]
        %v466 = vld [vmem:[#allocation7 + $0x38] sm:$0xf]
        %v467 = vld [vmem:[#allocation7 + $0x3c] sm:$0xf]
        %v468 = vld [vmem:[%s4] sm:$0x1]
        %v470 = vlaneseq
        %v471 = vshrl.u32 %v470, 7
        %v472 = vsub.s32 0, %v471
        %v473 = vrot.slane %v468, %v472
        %v491 = vunpack.c.l.b16 %v452
        %v492 = vunpack.c.l.b16 %v453
        %v493 = vunpack.c.l.b16 %v454
        %v494 = vunpack.c.l.b16 %v455
        %v495 = vunpack.c.l.b16 %v456
        %v496 = vunpack.c.l.b16 %v457
        %v497 = vunpack.c.l.b16 %v458
        %v498 = vunpack.c.l.b16 %v459
        %v499 = vunpack.c.l.b16 %v460
        %v500 = vunpack.c.l.b16 %v461
        %v501 = vunpack.c.l.b16 %v462
        %v502 = vunpack.c.l.b16 %v463
        %v503 = vunpack.c.l.b16 %v464
        %v504 = vunpack.c.l.b16 %v465
        %v505 = vunpack.c.l.b16 %v466
        %v506 = vunpack.c.l.b16 %v467
        %v507 = vpack.c.b16 %v492, %v491
        %v508 = vpack.c.b16 %v494, %v493
        %v509 = vpack.c.b16 %v496, %v495
        %v510 = vpack.c.b16 %v498, %v497
        %v511 = vpack.c.b16 %v500, %v499
        %v512 = vpack.c.b16 %v502, %v501
        %v513 = vpack.c.b16 %v504, %v503
        %v514 = vpack.c.b16 %v506, %v505
        %523 = vmatprep.subr.bf16.mxu0 0
        %524 = vmatpush1.bf16.msra.mxu0 %v507
        %525 = vmatprep.subr.bf16.mxu0 0
        %526 = vmatpush1.bf16.msra.mxu0 %v508
        %527 = vmatprep.subr.bf16.mxu0 0
        %528 = vmatpush1.bf16.msra.mxu0 %v509
        %529 = vmatprep.subr.bf16.mxu0 0
        %530 = vmatpush1.bf16.msra.mxu0 %v510
        %531 = vmatprep.subr.bf16.mxu0 0
        %532 = vmatpush1.bf16.msra.mxu0 %v511
        %533 = vmatprep.subr.bf16.mxu0 0
        %534 = vmatpush1.bf16.msra.mxu0 %v512
        %535 = vmatprep.subr.bf16.mxu0 0
        %536 = vmatpush1.bf16.msra.mxu0 %v513
        %537 = vmatprep.subr.bf16.mxu0 0
        %538 = vmatpush1.bf16.msra.mxu0 %v514
        %539 = vmatprep.subr.bf16.mxu0 0
        %540 = vmatpush1.bf16.msra.mxu0 0
        %541 = vmatprep.subr.bf16.mxu0 0
        %542 = vmatpush1.bf16.msra.mxu0 0
        %543 = vmatprep.subr.bf16.mxu0 0
        %544 = vmatpush1.bf16.msra.mxu0 0
        %545 = vmatprep.subr.bf16.mxu0 0
        %546 = vmatpush1.bf16.msra.mxu0 0
        %547 = vmatprep.subr.bf16.mxu0 0
        %548 = vmatpush1.bf16.msra.mxu0 0
        %549 = vmatprep.subr.bf16.mxu0 0
        %550 = vmatpush1.bf16.msra.mxu0 0
        %551 = vmatprep.subr.bf16.mxu0 0
        %552 = vmatpush1.bf16.msra.mxu0 0
        %553 = vmatprep.subr.bf16.mxu0 0
        %554 = vmatpush1.bf16.msra.mxu0 0
        %555 = vmatprep.mubr.bf16.mxu0 0
        %556 = vmatmul.mubr.bf16.gmra.mrb[0].mxu0 %v444
        %v557 = vpop.f32.mrb[0].mxu0
        %v558 = vadd.f32 %v473, %v557
        %v559 = vpop.f32.mrb[0].mxu0
        %v560 = vpop.f32.mrb[0].mxu0
        %v561 = vadd.f32 %v473, %v560
        %v562 = vpop.f32.mrb[0].mxu0
        %563 = vmatprep.mubr.bf16.mxu0 0
        %564 = vmatmul.mubr.bf16.gmra.mrb[0].mxu0 %v445
        %v565 = vpop.f32.mrb[0].mxu0
        %v566 = vadd.f32 %v473, %v565
        %v567 = vpop.f32.mrb[0].mxu0
        %v568 = vpop.f32.mrb[0].mxu0
        %v569 = vadd.f32 %v473, %v568
        %v570 = vpop.f32.mrb[0].mxu0
        %571 = vmatprep.mubr.bf16.mxu0 0
        %572 = vmatmul.mubr.bf16.gmra.mrb[0].mxu0 %v446
        %v573 = vpop.f32.mrb[0].mxu0
        %v574 = vadd.f32 %v473, %v573
        %v575 = vpop.f32.mrb[0].mxu0
        %v576 = vpop.f32.mrb[0].mxu0
        %v577 = vadd.f32 %v473, %v576
        %v578 = vpop.f32.mrb[0].mxu0
        %579 = vmatprep.mubr.bf16.mxu0 0
        %580 = vmatmul.mubr.bf16.gmra.mrb[0].mxu0 %v447
        %v581 = vpop.f32.mrb[0].mxu0
        %v582 = vadd.f32 %v473, %v581
        %v583 = vpop.f32.mrb[0].mxu0
        %v584 = vpop.f32.mrb[0].mxu0
        %v585 = vadd.f32 %v473, %v584
        %v586 = vpop.f32.mrb[0].mxu0
        %587 = vmatprep.mubr.bf16.mxu0 0
        %588 = vmatmul.mubr.bf16.gmra.mrb[0].mxu0 %v448
        %v589 = vpop.f32.mrb[0].mxu0
        %v590 = vadd.f32 %v473, %v589
        %v591 = vpop.f32.mrb[0].mxu0
        %v592 = vpop.f32.mrb[0].mxu0
        %v593 = vadd.f32 %v473, %v592
        %v594 = vpop.f32.mrb[0].mxu0
        %595 = vmatprep.mubr.bf16.mxu0 0
        %596 = vmatmul.mubr.bf16.gmra.mrb[0].mxu0 %v449
        %v597 = vpop.f32.mrb[0].mxu0
        %v598 = vadd.f32 %v473, %v597
        %v599 = vpop.f32.mrb[0].mxu0
        %v600 = vpop.f32.mrb[0].mxu0
        %v601 = vadd.f32 %v473, %v600
        %v602 = vpop.f32.mrb[0].mxu0
        %603 = vmatprep.mubr.bf16.mxu0 0
        %604 = vmatmul.mubr.bf16.gmra.mrb[0].mxu0 %v450
        %v605 = vpop.f32.mrb[0].mxu0
        %v606 = vadd.f32 %v473, %v605
        %v607 = vpop.f32.mrb[0].mxu0
        %v608 = vpop.f32.mrb[0].mxu0
        %v609 = vadd.f32 %v473, %v608
        %v610 = vpop.f32.mrb[0].mxu0
        %611 = vmatprep.mubr.bf16.mxu0 0
        %612 = vmatmul.mubr.bf16.gmra.mrb[0].mxu0 %v451
        %v613 = vpop.f32.mrb[0].mxu0
        %v614 = vadd.f32 %v473, %v613
        %v615 = vpop.f32.mrb[0].mxu0
        %v616 = vpop.f32.mrb[0].mxu0
        %v617 = vadd.f32 %v473, %v616
        %v618 = vpop.f32.mrb[0].mxu0
        %619 = vdwg.mxu0
        %v620 = vmax.f32 %v558, 0.0
        %v621 = vmax.f32 %v561, 0.0
        %v622 = vmax.f32 %v566, 0.0
        %v623 = vmax.f32 %v569, 0.0
        %v624 = vmax.f32 %v574, 0.0
        %v625 = vmax.f32 %v577, 0.0
        %v626 = vmax.f32 %v582, 0.0
        %v627 = vmax.f32 %v585, 0.0
        %v628 = vmax.f32 %v590, 0.0
        %v629 = vmax.f32 %v593, 0.0
        %v630 = vmax.f32 %v598, 0.0
        %v631 = vmax.f32 %v601, 0.0
        %v632 = vmax.f32 %v606, 0.0
        %v633 = vmax.f32 %v609, 0.0
        %v634 = vmax.f32 %v614, 0.0
        %v635 = vmax.f32 %v617, 0.0
        %v636 = vmax.f32 %v620, %v622
        %v637 = vmax.f32 %v621, %v623
        %v638 = vmax.f32 %v636, %v624
        %v639 = vmax.f32 %v637, %v625
        %v640 = vmax.f32 %v638, %v626
        %v641 = vmax.f32 %v639, %v627
        %v642 = vmax.f32 %v640, %v628
        %v643 = vmax.f32 %v641, %v629
        %v644 = vmax.f32 %v642, %v630
        %v645 = vmax.f32 %v643, %v631
        %v646 = vmax.f32 %v644, %v632
        %v647 = vmax.f32 %v645, %v633
        %v648 = vmax.f32 %v646, %v634
        %v649 = vmax.f32 %v647, %v635
        %650 = vst [vmem:[%s269] sm:$0xff] %v648
        %651 = vst [vmem:[%s269 + $0x8] sm:$0xff] %v649
        %s652 = sand.u32 %s141, 1
        %s653 = scalar_lea.sflag [#allocation4], %s652
        %s654 = sand.u32 %s141, 1
        %s655 = smul.addr %s654, 16
        %s656 = scalar_lea.vmem [#allocation8], %s655
        // Predicated region
        $region53: #{tpu_custom_call.1} parent=39 // pred_check
          %p657 = pneg %p151
        $region54: #{tpu_custom_call.1} parent=39 // pred_check_branch
          %659 = sbr.rel (%p657) target = $region56
        $region55: #{tpu_custom_call.1} parent=39 // pred_region
          %s660 = smul.u32 2, %s23
          %s662 = ssub.s32 256, 256
          %663 = vsyncadd %s653, %s662
          %s664 = smul.addr %s660, 128
          %s665 = scalar_lea.hbm %s5, %s664
          %s666 = sshll.u32 %s656, 4
          %s667 = int_to_ptr.vmem [resolvable:$true] %s666
          %672 = dma.vmem_to_hbm [thread:$0]  %s667, 256, %s665, %s653, 128, 128, 8
        $region56: #{tpu_custom_call.1} parent=39 // pred_fallthru
          _
      $region40: #{tpu_custom_call.1} parent=5 // pred_fallthru
        _
      %p673 = scmp.le.s32.totalorder 2, %s18
      // Predicated region
      $region57: #{tpu_custom_call.1} parent=5 // pred_check
        %p674 = pneg %p673
      $region58: #{tpu_custom_call.1} parent=5 // pred_check_branch
        %676 = sbr.rel (%p674) target = $region60
      $region59: #{tpu_custom_call.1} parent=5 // pred_region
        %s677 = ssub.s32 %s18, 2
        // Predicated region
        $region61: #{tpu_custom_call.1} parent=59 // pred_check
          %p678 = pneg %p157
        $region62: #{tpu_custom_call.1} parent=59 // pred_check_branch
          %680 = sbr.rel (%p678) target = $region64
        $region63: #{tpu_custom_call.1} parent=59 // pred_region
          %s681 = sand.u32 %s142, 1
          %s682 = scalar_lea.sflag [#allocation4], %s681
          %s683 = sand.u32 %s142, 1
          %s684 = smul.addr %s683, 16
          %s685 = scalar_lea.vmem [#allocation8], %s684
          %686 = dma.done %s682, 256
        $region64: #{tpu_custom_call.1} parent=59 // pred_fallthru
          _
      $region60: #{tpu_custom_call.1} parent=5 // pred_fallthru
        _
    $region6: #{tpu_custom_call.1} parent=1 // loop_footer
      %s22 = sadd.s32 1, %s18
    $region7: #{tpu_custom_call.1} parent=1 // loop_footer_branch
      %17 = sbr.rel target = $region3
    $region8: #{tpu_custom_call.1} parent=1 // loop_exit
      _
    %687 = vsyncpa [#allocation3], 1
    %s688 = scalar_lea.sflag [#allocation3], 1
    %689 = vsyncpa %s688, 1
    %690 = vsyncpa [#allocation6], 1
    %691 = vsyncpa [#allocation4], 1
    %s692 = scalar_lea.sflag [#allocation4], 1
    %693 = vsyncpa %s692, 1

</llo_original>
